<compile_context>
chip_gen: v5e
topology: v5e:2x2
jax: 0.10.0
libtpu: 0.0.40
codegen_flags: <defaults>
</compile_context>

<pallas_src>
import functools

import jax
import jax.numpy as jnp
from jax.experimental import pallas as pl
from jax.experimental.pallas import tpu as pltpu


def _preemph_fir_kernel(x_ref, y_ref, carry_ref, *, w1):
    """y[:, n] = x[:, n-1] + w1 * x[:, n] along lanes; left halo carried across tiles.

    x_ref, y_ref : VMEM f32[2B, TILE_S]  (both signals stacked on sublanes, time on lanes)
    carry_ref    : VMEM f32[2B, 1]       last time-sample of the previous tile
    """
    # First time-tile: the left halo is the conv's zero padding.
    @pl.when(pl.program_id(0) == 0)
    def _init():
        carry_ref[...] = jnp.zeros_like(carry_ref)

    x = x_ref[...]
    # x[n-1]: shift right by one along the time (lane) axis; slot 0 comes from the
    # carried halo (zero on the first tile).
    x_m1 = jnp.concatenate([carry_ref[...], x[:, :-1]], axis=1)
    y_ref[...] = x_m1 + w1 * x            # taps specialized: w0 = 1, w2 = 0
    # Save this tile's last sample as the next tile's left halo.
    carry_ref[...] = x[:, -1:]


def pre_emph_hp(output, target, fs=48000, *, time_tile=2048):
    """PreEmph(filter_type='hp').forward(output, target) on TPU.

    output, target: (seq_len, batch, 1) arrays
    returns       : pair of (seq_len, batch, 1) float32 arrays (same as the module).
    """
    assert output.shape == target.shape
    S, B, C = output.shape
    assert C == 1, "FIRFilter is Conv1d(1, 1, ...): channel dim must be 1"

    a1 = 5965.9 * 2.0 * 3.1416 / fs       # same constant (3.1416, not pi) as the module
    w1 = -float(a1)

    # Fuse both signals into one lane-dense (2B, S) slab: time on lanes.
    x = jnp.concatenate(
        [jnp.transpose(output[..., 0], (1, 0)),
         jnp.transpose(target[..., 0], (1, 0))],
        axis=0,
    ).astype(jnp.float32)

    # Tile along time. time_tile must be a multiple of 128 (lane width); if the
    # sequence fits in one tile, a single full-extent block is used instead.
    tile = S if S <= time_tile else time_tile
    grid = (pl.cdiv(S, tile),)

    y = pl.pallas_call(
        functools.partial(_preemph_fir_kernel, w1=w1),
        out_shape=jax.ShapeDtypeStruct((2 * B, S), jnp.float32),
        grid=grid,
        in_specs=[pl.BlockSpec((2 * B, tile), lambda j: (0, j))],
        out_specs=pl.BlockSpec((2 * B, tile), lambda j: (0, j)),
        scratch_shapes=[pltpu.VMEM((2 * B, 1), jnp.float32)],
        compiler_params=pltpu.CompilerParams(
            # Sequential over time: the 1-sample halo is carried between tiles.
            dimension_semantics=("arbitrary",),
        ),
    )(x)

    # (2B, S) -> two (S, B, 1) results.
    y_o = jnp.transpose(y[:B], (1, 0))[..., None]
    y_t = jnp.transpose(y[B:], (1, 0))[..., None]
    return y_o, y_t


def _preemph_ref(x, fs):
    """Pure-JAX reference of the PyTorch conv1d path; x: (S, B, 1)."""
    a1 = 5965.9 * 2.0 * 3.1416 / fs
    x2 = x[..., 0].astype(jnp.float32)                               # (S, B)
    x_m1 = jnp.concatenate([jnp.zeros_like(x2[:1]), x2[:-1]], axis=0)
    return (x_m1 - a1 * x2)[..., None]


if __name__ == "__main__":
    key = jax.random.PRNGKey(0)
    k_o, k_t, k2_o, k2_t = jax.random.split(key, 4)

    # Case 1: small shapes consistent with the module: (seq_len, batch, channels=1),
    # single time tile.
    S, B = 128, 4
    output = jax.random.normal(k_o, (S, B, 1), dtype=jnp.float32)
    target = jax.random.normal(k_t, (S, B, 1), dtype=jnp.float32)

    y_o, y_t = pre_emph_hp(output, target, fs=48000)
    jax.block_until_ready((y_o, y_t))

    assert y_o.shape == output.shape and y_t.shape == target.shape
    assert jnp.allclose(y_o, _preemph_ref(output, 48000), atol=1e-5, rtol=1e-5)
    assert jnp.allclose(y_t, _preemph_ref(target, 48000), atol=1e-5, rtol=1e-5)

    # Case 2: multi-tile time axis with a ragged last tile (exercises the carried
    # halo across tile boundaries and the partial final block).
    S2, B2 = 600, 3
    output2 = jax.random.normal(k2_o, (S2, B2, 1), dtype=jnp.float32)
    target2 = jax.random.normal(k2_t, (S2, B2, 1), dtype=jnp.float32)

    y2_o, y2_t = pre_emph_hp(output2, target2, fs=48000, time_tile=128)
    jax.block_until_ready((y2_o, y2_t))

    assert jnp.allclose(y2_o, _preemph_ref(output2, 48000), atol=1e-5, rtol=1e-5)
    assert jnp.allclose(y2_t, _preemph_ref(target2, 48000), atol=1e-5, rtol=1e-5)

    print("KERNEL_OK")
</pallas_src>

<mosaic_0001>
module attributes {stable_mosaic.version = 11 : i64} {
  func.func @_preemph_fir_kernel(%arg0: i32, %arg1: memref<8x128xf32, #tpu.memory_space<vmem>>, %arg2: memref<8x128xf32, #tpu.memory_space<vmem>>, %arg3: memref<8x1xf32, #tpu.memory_space<vmem>>) attributes {dimension_semantics = [#tpu.dimension_semantics<arbitrary>], iteration_bounds = array<i64: 1>, scalar_prefetch = 0 : i64, scratch_operands = 1 : i64, tpu.core_type = #tpu.core_type<tc>, window_params = [{transform_indices = @transform_0, window_bounds = array<i64: 8, 128>}, {transform_indices = @transform_1, window_bounds = array<i64: 8, 128>}]} {
    %c0_i32 = arith.constant 0 : i32
    %0 = arith.cmpi eq, %arg0, %c0_i32 : i32
    %1 = arith.extui %0 : i1 to i32
    %c0_i32_0 = arith.constant 0 : i32
    %2 = arith.cmpi ne, %1, %c0_i32_0 : i32
    scf.if %2 {
      %cst_8 = arith.constant 0.000000e+00 : f32
      %13 = vector.broadcast %cst_8 : f32 to vector<8x1xf32>
      %c0_9 = arith.constant 0 : index
      %c0_10 = arith.constant 0 : index
      %14 = vector.load %arg3[%c0_9, %c0_10] : memref<8x1xf32, #tpu.memory_space<vmem>>, vector<8x1xf32>
      tpu.vector_store %arg3[%c0_9, %c0_10], %13 {strides = array<i32>} : memref<8x1xf32, #tpu.memory_space<vmem>>, vector<8x1xf32>,
    } else {
    }
    %c0 = arith.constant 0 : index
    %c0_1 = arith.constant 0 : index
    %3 = vector.load %arg1[%c0, %c0_1] : memref<8x128xf32, #tpu.memory_space<vmem>>, vector<8x128xf32>
    %c0_2 = arith.constant 0 : index
    %c0_3 = arith.constant 0 : index
    %4 = vector.load %arg3[%c0_2, %c0_3] : memref<8x1xf32, #tpu.memory_space<vmem>>, vector<8x1xf32>
    %5 = vector.extract_strided_slice %3 {offsets = [0, 0], sizes = [8, 127], strides = [1, 1]} : vector<8x128xf32> to vector<8x127xf32>
    %6 = tpu.concatenate %4, %5 in 1 : vector<8x1xf32>, vector<8x127xf32> -> vector<8x128xf32>
    %cst = arith.constant -0.7809363 : f32
    %7 = vector.broadcast %cst : f32 to vector<8x128xf32>
    %8 = arith.mulf %7, %3 : vector<8x128xf32>
    %9 = arith.addf %6, %8 : vector<8x128xf32>
    %c0_4 = arith.constant 0 : index
    %c0_5 = arith.constant 0 : index
    %10 = vector.load %arg2[%c0_4, %c0_5] : memref<8x128xf32, #tpu.memory_space<vmem>>, vector<8x128xf32>
    tpu.vector_store %arg2[%c0_4, %c0_5], %9 {strides = array<i32>} : memref<8x128xf32, #tpu.memory_space<vmem>>, vector<8x128xf32>,
    %11 = vector.extract_strided_slice %3 {offsets = [0, 127], sizes = [8, 1], strides = [1, 1]} : vector<8x128xf32> to vector<8x1xf32>
    %c0_6 = arith.constant 0 : index
    %c0_7 = arith.constant 0 : index
    %12 = vector.load %arg3[%c0_6, %c0_7] : memref<8x1xf32, #tpu.memory_space<vmem>>, vector<8x1xf32>
    tpu.vector_store %arg3[%c0_6, %c0_7], %11 {strides = array<i32>} : memref<8x1xf32, #tpu.memory_space<vmem>>, vector<8x1xf32>,
    return
  }
  func.func @transform_0(%arg0: i32) -> (i32, i32) {
    %c0_i32 = arith.constant 0 : i32
    %c0_i32_0 = arith.constant 0 : i32
    return %c0_i32, %arg0 : i32, i32
  }
  func.func @transform_1(%arg0: i32) -> (i32, i32) {
    %c0_i32 = arith.constant 0 : i32
    %c0_i32_0 = arith.constant 0 : i32
    return %c0_i32, %arg0 : i32, i32
  }
}

</mosaic_0001>

<llo_original>
// kernel: tpu_custom_call.1
$region0: #{tpu_custom_call.1}
  #allocation0 [shape = 'u32[]', space=smem, size = 0x4, offset = 0x4, fixed_abs, tag = 'smem constant byte address 0x4 - core index']
  #allocation1 [shape = 'u32[72,128]{1,0:T(1,128)}', space=vmem, size = 0x9000, scoped, tag = 'internal scratch']
  #allocation2 [shape = 'f32[8,1]{1,0:T(8,128)}', space=vmem, size = 0x1000, scoped, tag = 'scratch operand']
  %s0 = inlined_call_operand.hbm [shape: f32[8,128], index: 0, kind: input, shape index: {}]
  %s1 = inlined_call_operand.hbm [shape: f32[8,128], index: 1, kind: output, shape index: {}]
  %s2 = sld [smem:[#allocation0]]
  $region22: #{tpu_custom_call.1} parent=0
    _
  %s4 = ssub.s32 1, %s2
  %s5 = scalar_select 0, %s4, %s2
  $region1: #{tpu_custom_call.1} parent=0
    #allocation3 [shape = 'u8[4096]{0}', space=vmem, size = 0x1000, scoped, tag = 'input window, operand 0, single buffered']
    #allocation4 [shape = 's32[1]{0}', space=sflag, size = 0x4, scoped, tag = 'scoped memory for tpu_custom_call.1']
    #allocation5 [shape = 's32[1]{0}', space=sflag, size = 0x4, scoped, tag = 'scoped memory for tpu_custom_call.1']
    #allocation6 [shape = 'u8[4096]{0}', space=vmem, size = 0x1000, scoped, tag = 'output window, operand 0, single buffered']
    %6 = vsyncpa [#allocation4], 0
    %7 = vsyncpa [#allocation5], 0
    // Predicated region
    $region2: #{tpu_custom_call.1} parent=1 // pred_check
      _
    $region3: #{tpu_custom_call.1} parent=1 // pred_check_branch
      %9 = sbr.rel (0) target = $region5
    $region4: #{tpu_custom_call.1} parent=1 // pred_region
      %11 = vsyncadd [#allocation4], 0
      %s13 = sshll.u32 %s0, 4
      %s14 = int_to_ptr.hbm [resolvable:$true] %s13
      %s15 = sshll.u32 [#allocation3], 4
      %s16 = int_to_ptr.vmem [resolvable:$true] %s15
      %18 = dma.hbm_to_vmem [thread:$0]  %s14, 128, %s16, [#allocation4]
    $region5: #{tpu_custom_call.1} parent=1 // pred_fallthru
      _
    // Predicated region
    $region6: #{tpu_custom_call.1} parent=1 // pred_check
      _
    $region7: #{tpu_custom_call.1} parent=1 // pred_check_branch
      %20 = sbr.rel (0) target = $region9
    $region8: #{tpu_custom_call.1} parent=1 // pred_region
      %22 = dma.done [#allocation4], 128
    $region9: #{tpu_custom_call.1} parent=1 // pred_fallthru
      _
    %p23 = scmp.eq.s32.totalorder 0, 0
    // Predicated region
    $region10: #{tpu_custom_call.1} parent=1 // pred_check
      %p24 = pneg %p23
    $region11: #{tpu_custom_call.1} parent=1 // pred_check_branch
      %26 = sbr.rel (%p24) target = $region13
    $region12: #{tpu_custom_call.1} parent=1 // pred_region
      %vm27 = vcmask 7168
      %28 = vst.msk [vmem:[#allocation2] sm:$0xff] %vm27, 0.0
    $region13: #{tpu_custom_call.1} parent=1 // pred_fallthru
      _
    %v29 = vld [vmem:[#allocation3] sm:$0xff]
    %v30 = vld [vmem:[#allocation2] sm:$0xff]
    %32 = vrot.lane.b32.xlu0 %v29, 1
    %v33 = vpop.permute.xlu0 %32
    %vm35 = vcmask 7168
    %v36 = vsel %vm35, %v30, %v33
    %v37 = vmul.f32 %v29, -0.7809363
    %v38 = vadd.f32 %v36, %v37
    %39 = vst [vmem:[#allocation6] sm:$0xff] %v38
    %40 = vst.msk [vmem:[#allocation2] sm:$0xff] %vm35, %v33
    // Predicated region
    $region14: #{tpu_custom_call.1} parent=1 // pred_check
      _
    $region15: #{tpu_custom_call.1} parent=1 // pred_check_branch
      %42 = sbr.rel (0) target = $region17
    $region16: #{tpu_custom_call.1} parent=1 // pred_region
      %44 = vsyncadd [#allocation5], 0
      %s46 = sshll.u32 [#allocation6], 4
      %s47 = int_to_ptr.vmem [resolvable:$true] %s46
      %s48 = sshll.u32 %s1, 4
      %s49 = int_to_ptr.hbm [resolvable:$true] %s48
      %51 = dma.vmem_to_hbm [thread:$0]  %s47, 128, %s49, [#allocation5]
    $region17: #{tpu_custom_call.1} parent=1 // pred_fallthru
      _
    // Predicated region
    $region18: #{tpu_custom_call.1} parent=1 // pred_check
      _
    $region19: #{tpu_custom_call.1} parent=1 // pred_check_branch
      %53 = sbr.rel (0) target = $region21
    $region20: #{tpu_custom_call.1} parent=1 // pred_region
      %55 = dma.done [#allocation5], 128
    $region21: #{tpu_custom_call.1} parent=1 // pred_fallthru
      _
    %56 = vsyncpa [#allocation4], 1
    %57 = vsyncpa [#allocation5], 1

</llo_original>
